<compile_context>
chip_gen: v6e
topology: v6e:2x2x1
jax: 0.10.0
libtpu: 0.0.40
codegen_flags: <defaults>
</compile_context>

<pallas_src>
import functools

import jax
import jax.numpy as jnp
from jax.experimental import pallas as pl
from jax.experimental.pallas import tpu as pltpu

MID = 4  # mid_channels in the PyTorch module


def _csam_kernel(x_ref, weff_ref, mask_ref, bias_ref, out_ref, *, C, H, W):
    """Fused CSAM forward on one (bn, C*H*W) lane-dense block.

    x_ref/out_ref : (bn, C*HW) VMEM blocks (flattened NCHW).
    weff_ref      : (C, 9) SMEM   -- conv1 folded into the 9 conv2 taps.
    mask_ref      : (9, HW) VMEM  -- per-tap f32 validity masks (zero padding).
    bias_ref      : (1, HW) VMEM  -- edge-aware conv1-bias map through conv2.
    """
    HW = H * W

    # ReLU'd channel planes (f32), each lane-dense (bn, HW); live across the
    # whole 9-tap loop (C extra f32 planes in VMEM -- cheap for C=4).
    ych = [
        jnp.maximum(x_ref[:, pl.ds(c * HW, HW)], 0.0).astype(jnp.float32)
        for c in range(C)
    ]

    # Fused 1x1 + 3x3 conv: per tap, mix channels with the fused weights,
    # shift with one XLU roll, zero out-of-image (and wrapped) positions with
    # a precomputed mask, accumulate.  9 rolls total.
    acc = None
    for kh in range(3):
        for kw in range(3):
            dh, dw = kh - 1, kw - 1
            tap = kh * 3 + kw
            ws = weff_ref[0, tap] * ych[0]
            for c in range(1, C):
                ws = ws + weff_ref[c, tap] * ych[c]
            shift = dh * W + dw                    # out[p] needs in[p + shift]
            if shift != 0:
                ws = pltpu.roll(ws, shift=(-shift) % HW, axis=1)
            if dh != 0 or dw != 0:                 # center tap is always valid
                ws = ws * mask_ref[pl.ds(tap, 1), :]
            acc = ws if acc is None else acc + ws

    acc = acc + bias_ref[...]                      # edge-aware bias term
    att = jax.nn.sigmoid(acc)                      # (bn, HW) attention map

    # Epilogue: out = x * att, one lane-aligned 128-multiple chunk per channel.
    for c in range(C):
        sl = pl.ds(c * HW, HW)
        out_ref[:, sl] = (x_ref[:, sl] * att).astype(out_ref.dtype)


def _choose_block_n(n, per_img_bytes, target_bytes=4 << 20, min_grid=2):
    """Pick (bn, n_pad, grid).

    bn is a multiple of 8 (or == n when n <= 8, where a full-extent block is
    legal and cheapest), sized so one block is ~target_bytes (~4 MiB).  For
    n > 8 the grid is kept >= 2 so v7x's two TensorCores both get work.  n is
    padded up to bn * grid in the wrapper (pad rows are harmless zeros)."""
    if n <= 8:
        return n, n, 1
    bn_max = max(8, (target_bytes // max(per_img_bytes, 1)) // 8 * 8)
    grid = max(min_grid, pl.cdiv(n, bn_max))
    bn = pl.cdiv(pl.cdiv(n, grid), 8) * 8
    n_pad = bn * grid
    return bn, n_pad, grid


def csam_pallas(x, conv1_w, conv1_b, conv2_w):
    """x: (N, C, H, W).  conv1_w: (MID, C) or (MID, C, 1, 1).  conv1_b: (MID,).
    conv2_w: (1, MID, 3, 3).  Returns x * sigmoid(conv2(conv1(relu(x))))."""
    N, C, H, W = x.shape
    HW = H * W

    # ---- fold conv1 (1x1, bias) into conv2 (3x3): no nonlinearity between ----
    w1 = conv1_w.reshape(MID, C).astype(jnp.float32)        # (MID, C)
    b1 = conv1_b.reshape(MID).astype(jnp.float32)           # (MID,)
    w2 = conv2_w.reshape(MID, 9).astype(jnp.float32)        # (MID, 9)
    w_eff = w1.T @ w2                                       # (C, 9)
    b_tap = b1 @ w2                                         # (9,)

    # Per-tap validity masks (zero padding) and edge-aware bias map: border
    # pixels see fewer bias-carrying taps because padded mid-features are 0.
    pos = jnp.arange(HW, dtype=jnp.int32)
    row, col = pos // W, pos % W
    mask_rows = []
    for kh in range(3):
        for kw in range(3):
            dh, dw = kh - 1, kw - 1
            valid = jnp.ones((HW,), dtype=bool)
            if dh == -1:
                valid &= row >= 1
            elif dh == 1:
                valid &= row <= H - 2
            if dw == -1:
                valid &= col >= 1
            elif dw == 1:
                valid &= col <= W - 2
            mask_rows.append(valid)
    masks = jnp.stack(mask_rows).astype(jnp.float32)             # (9, HW)
    bias_map = (b_tap[:, None] * masks).sum(0, keepdims=True)    # (1, HW)

    # ---- lane-dense flattened layout + padded batch blocking ----
    # TODO(synk): for H*W not a multiple of 128 (e.g. 14x14), pad the spatial
    # plane in the wrapper so per-channel slices stay lane-aligned.
    x_flat = x.reshape(N, C * HW)                   # free (contiguous) reshape
    bn, n_pad, grid_n = _choose_block_n(N, C * HW * x.dtype.itemsize)
    if n_pad != N:
        x_flat = jnp.pad(x_flat, ((0, n_pad - N), (0, 0)))

    block_bytes = bn * C * HW * x.dtype.itemsize
    temp_bytes = bn * HW * 4 * (C + 3)              # f32 relu planes + ws/acc/att
    vmem_limit = int(min(48 << 20,                  # < v7x 64 MiB physical
                         max(32 << 20,
                             4 * block_bytes + temp_bytes + (4 << 20))))

    cost = pl.CostEstimate(
        flops=int(N * HW * (2 * C * 9 + 2 * C + 20)),
        transcendentals=int(N * HW),
        bytes_accessed=int(2 * N * C * HW * x.dtype.itemsize),
    )

    out_flat = pl.pallas_call(
        functools.partial(_csam_kernel, C=C, H=H, W=W),
        out_shape=jax.ShapeDtypeStruct((n_pad, C * HW), x.dtype),
        grid=(grid_n,),
        in_specs=[
            pl.BlockSpec((bn, C * HW), lambda n: (n, 0)),
            pl.BlockSpec(memory_space=pltpu.MemorySpace.SMEM),   # W_eff (C,9)
            pl.BlockSpec((9, HW), lambda n: (0, 0)),             # tap masks
            pl.BlockSpec((1, HW), lambda n: (0, 0)),             # bias map
        ],
        out_specs=pl.BlockSpec((bn, C * HW), lambda n: (n, 0)),
        compiler_params=pltpu.CompilerParams(
            dimension_semantics=("parallel",),
            vmem_limit_bytes=vmem_limit),
        cost_estimate=cost,
    )(x_flat, w_eff, masks, bias_map)
    return out_flat[:N].reshape(N, C, H, W)


def csam_reference(x, w1, b1, w2):
    """Pure-JAX reference matching the PyTorch forward (NCHW)."""
    y = jnp.maximum(x, 0.0)
    mid = jnp.einsum('nchw,mc->nmhw', y, w1) + b1[None, :, None, None]
    out = jax.lax.conv_general_dilated(
        mid, w2, window_strides=(1, 1), padding=((1, 1), (1, 1)),
        dimension_numbers=('NCHW', 'OIHW', 'NCHW'))
    att = jax.nn.sigmoid(out)            # (N, 1, H, W)
    return x * att


if __name__ == "__main__":
    C, H, W = 4, 16, 16

    key = jax.random.PRNGKey(0)
    kx, kw1, kw2, kb1, kx2 = jax.random.split(key, 5)

    # Parameter shapes per the module __init__:
    #   conv1.weight: (MID, C, 1, 1) -> stored as (MID, C)
    #   conv1.bias:   (MID,)  (constant-initialized to 0 in the module)
    #   conv2.weight: (1, MID, 3, 3), no bias
    w1 = jax.random.normal(kw1, (MID, C), jnp.float32) * 0.1
    b1 = jnp.zeros((MID,), jnp.float32)
    w2 = jax.random.normal(kw2, (1, MID, 3, 3), jnp.float32) * 0.1

    # --- main check: spec shapes (N=2), zero bias (as the module inits) ---
    N = 2
    x = jax.random.normal(kx, (N, C, H, W), jnp.float32)
    out = jax.block_until_ready(csam_pallas(x, w1, b1, w2))
    ref = jax.block_until_ready(csam_reference(x, w1, b1, w2))
    assert out.shape == (N, C, H, W)
    assert jnp.allclose(out, ref, atol=1e-5, rtol=1e-5), (
        f"max abs err = {jnp.max(jnp.abs(out - ref))}")

    # --- extra check: odd batch (exercises padding / multi-step grid) and a
    #     non-zero conv1 bias (exercises the edge-aware fused bias map) ---
    N2 = 10
    b1b = jax.random.normal(kb1, (MID,), jnp.float32) * 0.1
    x2 = jax.random.normal(kx2, (N2, C, H, W), jnp.float32)
    out2 = jax.block_until_ready(csam_pallas(x2, w1, b1b, w2))
    ref2 = jax.block_until_ready(csam_reference(x2, w1, b1b, w2))
    assert out2.shape == (N2, C, H, W)
    assert jnp.allclose(out2, ref2, atol=1e-5, rtol=1e-5), (
        f"max abs err = {jnp.max(jnp.abs(out2 - ref2))}")

    print("KERNEL_OK")
</pallas_src>

<mosaic_0001>
module attributes {stable_mosaic.version = 11 : i64} {
  func.func @_csam_kernel(%arg0: i32, %arg1: memref<2x1024xf32, #tpu.memory_space<vmem>>, %arg2: memref<4x9xf32, #tpu.memory_space<smem>>, %arg3: memref<9x256xf32, #tpu.memory_space<vmem>>, %arg4: memref<1x256xf32, #tpu.memory_space<vmem>>, %arg5: memref<2x1024xf32, #tpu.memory_space<vmem>>) attributes {dimension_semantics = [#tpu.dimension_semantics<parallel>], iteration_bounds = array<i64: 1>, scalar_prefetch = 0 : i64, scratch_operands = 0 : i64, tpu.core_type = #tpu.core_type<tc>, window_params = [{transform_indices = @transform_0, window_bounds = array<i64: 2, 1024>}, {transform_indices = @transform_1, window_bounds = array<i64: 4, 9>}, {pipeline_mode = #tpu.pipeline_mode<synchronous>, transform_indices = @transform_2, window_bounds = array<i64: 9, 256>}, {pipeline_mode = #tpu.pipeline_mode<synchronous>, transform_indices = @transform_3, window_bounds = array<i64: 1, 256>}, {transform_indices = @transform_4, window_bounds = array<i64: 2, 1024>}]} {
    %c0 = arith.constant 0 : index
    %c0_0 = arith.constant 0 : index
    %0 = vector.load %arg1[%c0, %c0_0] : memref<2x1024xf32, #tpu.memory_space<vmem>>, vector<2x256xf32>
    %cst = arith.constant 0.000000e+00 : f32
    %1 = vector.broadcast %cst : f32 to vector<2x256xf32>
    %2 = arith.maximumf %0, %1 : vector<2x256xf32>
    %c0_1 = arith.constant 0 : index
    %c256 = arith.constant 256 : index
    %3 = vector.load %arg1[%c0_1, %c256] : memref<2x1024xf32, #tpu.memory_space<vmem>>, vector<2x256xf32>
    %cst_2 = arith.constant 0.000000e+00 : f32
    %4 = vector.broadcast %cst_2 : f32 to vector<2x256xf32>
    %5 = arith.maximumf %3, %4 : vector<2x256xf32>
    %c0_3 = arith.constant 0 : index
    %c512 = arith.constant 512 : index
    %6 = vector.load %arg1[%c0_3, %c512] : memref<2x1024xf32, #tpu.memory_space<vmem>>, vector<2x256xf32>
    %cst_4 = arith.constant 0.000000e+00 : f32
    %7 = vector.broadcast %cst_4 : f32 to vector<2x256xf32>
    %8 = arith.maximumf %6, %7 : vector<2x256xf32>
    %c0_5 = arith.constant 0 : index
    %c768 = arith.constant 768 : index
    %9 = vector.load %arg1[%c0_5, %c768] : memref<2x1024xf32, #tpu.memory_space<vmem>>, vector<2x256xf32>
    %cst_6 = arith.constant 0.000000e+00 : f32
    %10 = vector.broadcast %cst_6 : f32 to vector<2x256xf32>
    %11 = arith.maximumf %9, %10 : vector<2x256xf32>
    %c0_7 = arith.constant 0 : index
    %c0_8 = arith.constant 0 : index
    %12 = memref.load %arg2[%c0_7, %c0_8] : memref<4x9xf32, #tpu.memory_space<smem>>
    %13 = vector.broadcast %12 : f32 to vector<2x256xf32>
    %14 = arith.mulf %13, %2 : vector<2x256xf32>
    %c1 = arith.constant 1 : index
    %c0_9 = arith.constant 0 : index
    %15 = memref.load %arg2[%c1, %c0_9] : memref<4x9xf32, #tpu.memory_space<smem>>
    %16 = vector.broadcast %15 : f32 to vector<2x256xf32>
    %17 = arith.mulf %16, %5 : vector<2x256xf32>
    %18 = arith.addf %14, %17 : vector<2x256xf32>
    %c2 = arith.constant 2 : index
    %c0_10 = arith.constant 0 : index
    %19 = memref.load %arg2[%c2, %c0_10] : memref<4x9xf32, #tpu.memory_space<smem>>
    %20 = vector.broadcast %19 : f32 to vector<2x256xf32>
    %21 = arith.mulf %20, %8 : vector<2x256xf32>
    %22 = arith.addf %18, %21 : vector<2x256xf32>
    %c3 = arith.constant 3 : index
    %c0_11 = arith.constant 0 : index
    %23 = memref.load %arg2[%c3, %c0_11] : memref<4x9xf32, #tpu.memory_space<smem>>
    %24 = vector.broadcast %23 : f32 to vector<2x256xf32>
    %25 = arith.mulf %24, %11 : vector<2x256xf32>
    %26 = arith.addf %22, %25 : vector<2x256xf32>
    %c17_i32 = arith.constant 17 : i32
    %27 = tpu.dynamic_rotate %26 by %c17_i32 dim 1 : vector<2x256xf32>, i32 -> vector<2x256xf32>
    %c0_12 = arith.constant 0 : index
    %c0_13 = arith.constant 0 : index
    %28 = vector.load %arg3[%c0_12, %c0_13] : memref<9x256xf32, #tpu.memory_space<vmem>>, vector<1x256xf32>
    %29 = vector.broadcast %28 : vector<1x256xf32> to vector<2x256xf32>
    %30 = arith.mulf %27, %29 : vector<2x256xf32>
    %c0_14 = arith.constant 0 : index
    %c1_15 = arith.constant 1 : index
    %31 = memref.load %arg2[%c0_14, %c1_15] : memref<4x9xf32, #tpu.memory_space<smem>>
    %32 = vector.broadcast %31 : f32 to vector<2x256xf32>
    %33 = arith.mulf %32, %2 : vector<2x256xf32>
    %c1_16 = arith.constant 1 : index
    %c1_17 = arith.constant 1 : index
    %34 = memref.load %arg2[%c1_16, %c1_17] : memref<4x9xf32, #tpu.memory_space<smem>>
    %35 = vector.broadcast %34 : f32 to vector<2x256xf32>
    %36 = arith.mulf %35, %5 : vector<2x256xf32>
    %37 = arith.addf %33, %36 : vector<2x256xf32>
    %c2_18 = arith.constant 2 : index
    %c1_19 = arith.constant 1 : index
    %38 = memref.load %arg2[%c2_18, %c1_19] : memref<4x9xf32, #tpu.memory_space<smem>>
    %39 = vector.broadcast %38 : f32 to vector<2x256xf32>
    %40 = arith.mulf %39, %8 : vector<2x256xf32>
    %41 = arith.addf %37, %40 : vector<2x256xf32>
    %c3_20 = arith.constant 3 : index
    %c1_21 = arith.constant 1 : index
    %42 = memref.load %arg2[%c3_20, %c1_21] : memref<4x9xf32, #tpu.memory_space<smem>>
    %43 = vector.broadcast %42 : f32 to vector<2x256xf32>
    %44 = arith.mulf %43, %11 : vector<2x256xf32>
    %45 = arith.addf %41, %44 : vector<2x256xf32>
    %c16_i32 = arith.constant 16 : i32
    %46 = tpu.dynamic_rotate %45 by %c16_i32 dim 1 : vector<2x256xf32>, i32 -> vector<2x256xf32>
    %c1_22 = arith.constant 1 : index
    %c0_23 = arith.constant 0 : index
    %47 = vector.load %arg3[%c1_22, %c0_23] : memref<9x256xf32, #tpu.memory_space<vmem>>, vector<1x256xf32>
    %48 = vector.broadcast %47 : vector<1x256xf32> to vector<2x256xf32>
    %49 = arith.mulf %46, %48 : vector<2x256xf32>
    %50 = arith.addf %30, %49 : vector<2x256xf32>
    %c0_24 = arith.constant 0 : index
    %c2_25 = arith.constant 2 : index
    %51 = memref.load %arg2[%c0_24, %c2_25] : memref<4x9xf32, #tpu.memory_space<smem>>
    %52 = vector.broadcast %51 : f32 to vector<2x256xf32>
    %53 = arith.mulf %52, %2 : vector<2x256xf32>
    %c1_26 = arith.constant 1 : index
    %c2_27 = arith.constant 2 : index
    %54 = memref.load %arg2[%c1_26, %c2_27] : memref<4x9xf32, #tpu.memory_space<smem>>
    %55 = vector.broadcast %54 : f32 to vector<2x256xf32>
    %56 = arith.mulf %55, %5 : vector<2x256xf32>
    %57 = arith.addf %53, %56 : vector<2x256xf32>
    %c2_28 = arith.constant 2 : index
    %c2_29 = arith.constant 2 : index
    %58 = memref.load %arg2[%c2_28, %c2_29] : memref<4x9xf32, #tpu.memory_space<smem>>
    %59 = vector.broadcast %58 : f32 to vector<2x256xf32>
    %60 = arith.mulf %59, %8 : vector<2x256xf32>
    %61 = arith.addf %57, %60 : vector<2x256xf32>
    %c3_30 = arith.constant 3 : index
    %c2_31 = arith.constant 2 : index
    %62 = memref.load %arg2[%c3_30, %c2_31] : memref<4x9xf32, #tpu.memory_space<smem>>
    %63 = vector.broadcast %62 : f32 to vector<2x256xf32>
    %64 = arith.mulf %63, %11 : vector<2x256xf32>
    %65 = arith.addf %61, %64 : vector<2x256xf32>
    %c15_i32 = arith.constant 15 : i32
    %66 = tpu.dynamic_rotate %65 by %c15_i32 dim 1 : vector<2x256xf32>, i32 -> vector<2x256xf32>
    %c2_32 = arith.constant 2 : index
    %c0_33 = arith.constant 0 : index
    %67 = vector.load %arg3[%c2_32, %c0_33] : memref<9x256xf32, #tpu.memory_space<vmem>>, vector<1x256xf32>
    %68 = vector.broadcast %67 : vector<1x256xf32> to vector<2x256xf32>
    %69 = arith.mulf %66, %68 : vector<2x256xf32>
    %70 = arith.addf %50, %69 : vector<2x256xf32>
    %c0_34 = arith.constant 0 : index
    %c3_35 = arith.constant 3 : index
    %71 = memref.load %arg2[%c0_34, %c3_35] : memref<4x9xf32, #tpu.memory_space<smem>>
    %72 = vector.broadcast %71 : f32 to vector<2x256xf32>
    %73 = arith.mulf %72, %2 : vector<2x256xf32>
    %c1_36 = arith.constant 1 : index
    %c3_37 = arith.constant 3 : index
    %74 = memref.load %arg2[%c1_36, %c3_37] : memref<4x9xf32, #tpu.memory_space<smem>>
    %75 = vector.broadcast %74 : f32 to vector<2x256xf32>
    %76 = arith.mulf %75, %5 : vector<2x256xf32>
    %77 = arith.addf %73, %76 : vector<2x256xf32>
    %c2_38 = arith.constant 2 : index
    %c3_39 = arith.constant 3 : index
    %78 = memref.load %arg2[%c2_38, %c3_39] : memref<4x9xf32, #tpu.memory_space<smem>>
    %79 = vector.broadcast %78 : f32 to vector<2x256xf32>
    %80 = arith.mulf %79, %8 : vector<2x256xf32>
    %81 = arith.addf %77, %80 : vector<2x256xf32>
    %c3_40 = arith.constant 3 : index
    %c3_41 = arith.constant 3 : index
    %82 = memref.load %arg2[%c3_40, %c3_41] : memref<4x9xf32, #tpu.memory_space<smem>>
    %83 = vector.broadcast %82 : f32 to vector<2x256xf32>
    %84 = arith.mulf %83, %11 : vector<2x256xf32>
    %85 = arith.addf %81, %84 : vector<2x256xf32>
    %c1_i32 = arith.constant 1 : i32
    %86 = tpu.dynamic_rotate %85 by %c1_i32 dim 1 : vector<2x256xf32>, i32 -> vector<2x256xf32>
    %c3_42 = arith.constant 3 : index
    %c0_43 = arith.constant 0 : index
    %87 = vector.load %arg3[%c3_42, %c0_43] : memref<9x256xf32, #tpu.memory_space<vmem>>, vector<1x256xf32>
    %88 = vector.broadcast %87 : vector<1x256xf32> to vector<2x256xf32>
    %89 = arith.mulf %86, %88 : vector<2x256xf32>
    %90 = arith.addf %70, %89 : vector<2x256xf32>
    %c0_44 = arith.constant 0 : index
    %c4 = arith.constant 4 : index
    %91 = memref.load %arg2[%c0_44, %c4] : memref<4x9xf32, #tpu.memory_space<smem>>
    %92 = vector.broadcast %91 : f32 to vector<2x256xf32>
    %93 = arith.mulf %92, %2 : vector<2x256xf32>
    %c1_45 = arith.constant 1 : index
    %c4_46 = arith.constant 4 : index
    %94 = memref.load %arg2[%c1_45, %c4_46] : memref<4x9xf32, #tpu.memory_space<smem>>
    %95 = vector.broadcast %94 : f32 to vector<2x256xf32>
    %96 = arith.mulf %95, %5 : vector<2x256xf32>
    %97 = arith.addf %93, %96 : vector<2x256xf32>
    %c2_47 = arith.constant 2 : index
    %c4_48 = arith.constant 4 : index
    %98 = memref.load %arg2[%c2_47, %c4_48] : memref<4x9xf32, #tpu.memory_space<smem>>
    %99 = vector.broadcast %98 : f32 to vector<2x256xf32>
    %100 = arith.mulf %99, %8 : vector<2x256xf32>
    %101 = arith.addf %97, %100 : vector<2x256xf32>
    %c3_49 = arith.constant 3 : index
    %c4_50 = arith.constant 4 : index
    %102 = memref.load %arg2[%c3_49, %c4_50] : memref<4x9xf32, #tpu.memory_space<smem>>
    %103 = vector.broadcast %102 : f32 to vector<2x256xf32>
    %104 = arith.mulf %103, %11 : vector<2x256xf32>
    %105 = arith.addf %101, %104 : vector<2x256xf32>
    %106 = arith.addf %90, %105 : vector<2x256xf32>
    %c0_51 = arith.constant 0 : index
    %c5 = arith.constant 5 : index
    %107 = memref.load %arg2[%c0_51, %c5] : memref<4x9xf32, #tpu.memory_space<smem>>
    %108 = vector.broadcast %107 : f32 to vector<2x256xf32>
    %109 = arith.mulf %108, %2 : vector<2x256xf32>
    %c1_52 = arith.constant 1 : index
    %c5_53 = arith.constant 5 : index
    %110 = memref.load %arg2[%c1_52, %c5_53] : memref<4x9xf32, #tpu.memory_space<smem>>
    %111 = vector.broadcast %110 : f32 to vector<2x256xf32>
    %112 = arith.mulf %111, %5 : vector<2x256xf32>
    %113 = arith.addf %109, %112 : vector<2x256xf32>
    %c2_54 = arith.constant 2 : index
    %c5_55 = arith.constant 5 : index
    %114 = memref.load %arg2[%c2_54, %c5_55] : memref<4x9xf32, #tpu.memory_space<smem>>
    %115 = vector.broadcast %114 : f32 to vector<2x256xf32>
    %116 = arith.mulf %115, %8 : vector<2x256xf32>
    %117 = arith.addf %113, %116 : vector<2x256xf32>
    %c3_56 = arith.constant 3 : index
    %c5_57 = arith.constant 5 : index
    %118 = memref.load %arg2[%c3_56, %c5_57] : memref<4x9xf32, #tpu.memory_space<smem>>
    %119 = vector.broadcast %118 : f32 to vector<2x256xf32>
    %120 = arith.mulf %119, %11 : vector<2x256xf32>
    %121 = arith.addf %117, %120 : vector<2x256xf32>
    %c255_i32 = arith.constant 255 : i32
    %122 = tpu.dynamic_rotate %121 by %c255_i32 dim 1 : vector<2x256xf32>, i32 -> vector<2x256xf32>
    %c5_58 = arith.constant 5 : index
    %c0_59 = arith.constant 0 : index
    %123 = vector.load %arg3[%c5_58, %c0_59] : memref<9x256xf32, #tpu.memory_space<vmem>>, vector<1x256xf32>
    %124 = vector.broadcast %123 : vector<1x256xf32> to vector<2x256xf32>
    %125 = arith.mulf %122, %124 : vector<2x256xf32>
    %126 = arith.addf %106, %125 : vector<2x256xf32>
    %c0_60 = arith.constant 0 : index
    %c6 = arith.constant 6 : index
    %127 = memref.load %arg2[%c0_60, %c6] : memref<4x9xf32, #tpu.memory_space<smem>>
    %128 = vector.broadcast %127 : f32 to vector<2x256xf32>
    %129 = arith.mulf %128, %2 : vector<2x256xf32>
    %c1_61 = arith.constant 1 : index
    %c6_62 = arith.constant 6 : index
    %130 = memref.load %arg2[%c1_61, %c6_62] : memref<4x9xf32, #tpu.memory_space<smem>>
    %131 = vector.broadcast %130 : f32 to vector<2x256xf32>
    %132 = arith.mulf %131, %5 : vector<2x256xf32>
    %133 = arith.addf %129, %132 : vector<2x256xf32>
    %c2_63 = arith.constant 2 : index
    %c6_64 = arith.constant 6 : index
    %134 = memref.load %arg2[%c2_63, %c6_64] : memref<4x9xf32, #tpu.memory_space<smem>>
    %135 = vector.broadcast %134 : f32 to vector<2x256xf32>
    %136 = arith.mulf %135, %8 : vector<2x256xf32>
    %137 = arith.addf %133, %136 : vector<2x256xf32>
    %c3_65 = arith.constant 3 : index
    %c6_66 = arith.constant 6 : index
    %138 = memref.load %arg2[%c3_65, %c6_66] : memref<4x9xf32, #tpu.memory_space<smem>>
    %139 = vector.broadcast %138 : f32 to vector<2x256xf32>
    %140 = arith.mulf %139, %11 : vector<2x256xf32>
    %141 = arith.addf %137, %140 : vector<2x256xf32>
    %c241_i32 = arith.constant 241 : i32
    %142 = tpu.dynamic_rotate %141 by %c241_i32 dim 1 : vector<2x256xf32>, i32 -> vector<2x256xf32>
    %c6_67 = arith.constant 6 : index
    %c0_68 = arith.constant 0 : index
    %143 = vector.load %arg3[%c6_67, %c0_68] : memref<9x256xf32, #tpu.memory_space<vmem>>, vector<1x256xf32>
    %144 = vector.broadcast %143 : vector<1x256xf32> to vector<2x256xf32>
    %145 = arith.mulf %142, %144 : vector<2x256xf32>
    %146 = arith.addf %126, %145 : vector<2x256xf32>
    %c0_69 = arith.constant 0 : index
    %c7 = arith.constant 7 : index
    %147 = memref.load %arg2[%c0_69, %c7] : memref<4x9xf32, #tpu.memory_space<smem>>
    %148 = vector.broadcast %147 : f32 to vector<2x256xf32>
    %149 = arith.mulf %148, %2 : vector<2x256xf32>
    %c1_70 = arith.constant 1 : index
    %c7_71 = arith.constant 7 : index
    %150 = memref.load %arg2[%c1_70, %c7_71] : memref<4x9xf32, #tpu.memory_space<smem>>
    %151 = vector.broadcast %150 : f32 to vector<2x256xf32>
    %152 = arith.mulf %151, %5 : vector<2x256xf32>
    %153 = arith.addf %149, %152 : vector<2x256xf32>
    %c2_72 = arith.constant 2 : index
    %c7_73 = arith.constant 7 : index
    %154 = memref.load %arg2[%c2_72, %c7_73] : memref<4x9xf32, #tpu.memory_space<smem>>
    %155 = vector.broadcast %154 : f32 to vector<2x256xf32>
    %156 = arith.mulf %155, %8 : vector<2x256xf32>
    %157 = arith.addf %153, %156 : vector<2x256xf32>
    %c3_74 = arith.constant 3 : index
    %c7_75 = arith.constant 7 : index
    %158 = memref.load %arg2[%c3_74, %c7_75] : memref<4x9xf32, #tpu.memory_space<smem>>
    %159 = vector.broadcast %158 : f32 to vector<2x256xf32>
    %160 = arith.mulf %159, %11 : vector<2x256xf32>
    %161 = arith.addf %157, %160 : vector<2x256xf32>
    %c240_i32 = arith.constant 240 : i32
    %162 = tpu.dynamic_rotate %161 by %c240_i32 dim 1 : vector<2x256xf32>, i32 -> vector<2x256xf32>
    %c7_76 = arith.constant 7 : index
    %c0_77 = arith.constant 0 : index
    %163 = vector.load %arg3[%c7_76, %c0_77] : memref<9x256xf32, #tpu.memory_space<vmem>>, vector<1x256xf32>
    %164 = vector.broadcast %163 : vector<1x256xf32> to vector<2x256xf32>
    %165 = arith.mulf %162, %164 : vector<2x256xf32>
    %166 = arith.addf %146, %165 : vector<2x256xf32>
    %c0_78 = arith.constant 0 : index
    %c8 = arith.constant 8 : index
    %167 = memref.load %arg2[%c0_78, %c8] : memref<4x9xf32, #tpu.memory_space<smem>>
    %168 = vector.broadcast %167 : f32 to vector<2x256xf32>
    %169 = arith.mulf %168, %2 : vector<2x256xf32>
    %c1_79 = arith.constant 1 : index
    %c8_80 = arith.constant 8 : index
    %170 = memref.load %arg2[%c1_79, %c8_80] : memref<4x9xf32, #tpu.memory_space<smem>>
    %171 = vector.broadcast %170 : f32 to vector<2x256xf32>
    %172 = arith.mulf %171, %5 : vector<2x256xf32>
    %173 = arith.addf %169, %172 : vector<2x256xf32>
    %c2_81 = arith.constant 2 : index
    %c8_82 = arith.constant 8 : index
    %174 = memref.load %arg2[%c2_81, %c8_82] : memref<4x9xf32, #tpu.memory_space<smem>>
    %175 = vector.broadcast %174 : f32 to vector<2x256xf32>
    %176 = arith.mulf %175, %8 : vector<2x256xf32>
    %177 = arith.addf %173, %176 : vector<2x256xf32>
    %c3_83 = arith.constant 3 : index
    %c8_84 = arith.constant 8 : index
    %178 = memref.load %arg2[%c3_83, %c8_84] : memref<4x9xf32, #tpu.memory_space<smem>>
    %179 = vector.broadcast %178 : f32 to vector<2x256xf32>
    %180 = arith.mulf %179, %11 : vector<2x256xf32>
    %181 = arith.addf %177, %180 : vector<2x256xf32>
    %c239_i32 = arith.constant 239 : i32
    %182 = tpu.dynamic_rotate %181 by %c239_i32 dim 1 : vector<2x256xf32>, i32 -> vector<2x256xf32>
    %c8_85 = arith.constant 8 : index
    %c0_86 = arith.constant 0 : index
    %183 = vector.load %arg3[%c8_85, %c0_86] : memref<9x256xf32, #tpu.memory_space<vmem>>, vector<1x256xf32>
    %184 = vector.broadcast %183 : vector<1x256xf32> to vector<2x256xf32>
    %185 = arith.mulf %182, %184 : vector<2x256xf32>
    %186 = arith.addf %166, %185 : vector<2x256xf32>
    %c0_87 = arith.constant 0 : index
    %c0_88 = arith.constant 0 : index
    %187 = vector.load %arg4[%c0_87, %c0_88] : memref<1x256xf32, #tpu.memory_space<vmem>>, vector<1x256xf32>
    %188 = vector.broadcast %187 : vector<1x256xf32> to vector<2x256xf32>
    %189 = arith.addf %186, %188 : vector<2x256xf32>
    %190 = arith.negf %189 : vector<2x256xf32>
    %191 = math.exp %190 : vector<2x256xf32>
    %cst_89 = arith.constant 1.000000e+00 : f32
    %192 = vector.broadcast %cst_89 : f32 to vector<2x256xf32>
    %193 = arith.addf %192, %191 : vector<2x256xf32>
    %194 = arith.divf %192, %193 : vector<2x256xf32>
    %c0_90 = arith.constant 0 : index
    %c0_91 = arith.constant 0 : index
    %195 = vector.load %arg1[%c0_90, %c0_91] : memref<2x1024xf32, #tpu.memory_space<vmem>>, vector<2x256xf32>
    %196 = arith.mulf %195, %194 : vector<2x256xf32>
    %c0_92 = arith.constant 0 : index
    %c0_93 = arith.constant 0 : index
    %197 = vector.load %arg5[%c0_92, %c0_93] : memref<2x1024xf32, #tpu.memory_space<vmem>>, vector<2x256xf32>
    tpu.vector_store %arg5[%c0_92, %c0_93], %196 {strides = array<i32>} : memref<2x1024xf32, #tpu.memory_space<vmem>>, vector<2x256xf32>,
    %c0_94 = arith.constant 0 : index
    %c256_95 = arith.constant 256 : index
    %198 = vector.load %arg1[%c0_94, %c256_95] : memref<2x1024xf32, #tpu.memory_space<vmem>>, vector<2x256xf32>
    %199 = arith.mulf %198, %194 : vector<2x256xf32>
    %c0_96 = arith.constant 0 : index
    %c256_97 = arith.constant 256 : index
    %200 = vector.load %arg5[%c0_96, %c256_97] : memref<2x1024xf32, #tpu.memory_space<vmem>>, vector<2x256xf32>
    tpu.vector_store %arg5[%c0_96, %c256_97], %199 {strides = array<i32>} : memref<2x1024xf32, #tpu.memory_space<vmem>>, vector<2x256xf32>,
    %c0_98 = arith.constant 0 : index
    %c512_99 = arith.constant 512 : index
    %201 = vector.load %arg1[%c0_98, %c512_99] : memref<2x1024xf32, #tpu.memory_space<vmem>>, vector<2x256xf32>
    %202 = arith.mulf %201, %194 : vector<2x256xf32>
    %c0_100 = arith.constant 0 : index
    %c512_101 = arith.constant 512 : index
    %203 = vector.load %arg5[%c0_100, %c512_101] : memref<2x1024xf32, #tpu.memory_space<vmem>>, vector<2x256xf32>
    tpu.vector_store %arg5[%c0_100, %c512_101], %202 {strides = array<i32>} : memref<2x1024xf32, #tpu.memory_space<vmem>>, vector<2x256xf32>,
    %c0_102 = arith.constant 0 : index
    %c768_103 = arith.constant 768 : index
    %204 = vector.load %arg1[%c0_102, %c768_103] : memref<2x1024xf32, #tpu.memory_space<vmem>>, vector<2x256xf32>
    %205 = arith.mulf %204, %194 : vector<2x256xf32>
    %c0_104 = arith.constant 0 : index
    %c768_105 = arith.constant 768 : index
    %206 = vector.load %arg5[%c0_104, %c768_105] : memref<2x1024xf32, #tpu.memory_space<vmem>>, vector<2x256xf32>
    tpu.vector_store %arg5[%c0_104, %c768_105], %205 {strides = array<i32>} : memref<2x1024xf32, #tpu.memory_space<vmem>>, vector<2x256xf32>,
    return
  }
  func.func @transform_0(%arg0: i32) -> (i32, i32) {
    %c0_i32 = arith.constant 0 : i32
    %c0_i32_0 = arith.constant 0 : i32
    return %arg0, %c0_i32 : i32, i32
  }
  func.func @transform_1(%arg0: i32) -> (i32, i32) {
    %c0_i32 = arith.constant 0 : i32
    %c0_i32_0 = arith.constant 0 : i32
    %c0_i32_1 = arith.constant 0 : i32
    return %c0_i32, %c0_i32_0 : i32, i32
  }
  func.func @transform_2(%arg0: i32) -> (i32, i32) {
    %c0_i32 = arith.constant 0 : i32
    %c0_i32_0 = arith.constant 0 : i32
    %c0_i32_1 = arith.constant 0 : i32
    return %c0_i32, %c0_i32_0 : i32, i32
  }
  func.func @transform_3(%arg0: i32) -> (i32, i32) {
    %c0_i32 = arith.constant 0 : i32
    %c0_i32_0 = arith.constant 0 : i32
    %c0_i32_1 = arith.constant 0 : i32
    return %c0_i32, %c0_i32_0 : i32, i32
  }
  func.func @transform_4(%arg0: i32) -> (i32, i32) {
    %c0_i32 = arith.constant 0 : i32
    %c0_i32_0 = arith.constant 0 : i32
    return %arg0, %c0_i32 : i32, i32
  }
}

</mosaic_0001>

<llo_original>
// kernel: tpu_custom_call.1
$region0: #{tpu_custom_call.1}
  #allocation0 [shape = 'u32[]', space=smem, size = 0x4, offset = 0x4, fixed_abs, tag = 'smem constant byte address 0x4 - core index']
  #allocation1 [shape = 'u32[144,128]{1,0:T(1,128)}', space=vmem, size = 0x12000, scoped, tag = 'internal scratch']
  %s0 = inlined_call_operand.hbm [shape: f32[2,1024], index: 0, kind: input, shape index: {}]
  %s1 = inlined_call_operand.hbm [shape: f32[4,9], index: 1, kind: input, shape index: {}]
  %s2 = inlined_call_operand.hbm [shape: f32[9,256], index: 2, kind: input, shape index: {}]
  %s3 = inlined_call_operand.vmem [shape: f32[1,256], index: 3, kind: input, shape index: {}]
  %s4 = inlined_call_operand.hbm [shape: f32[2,1024], index: 4, kind: output, shape index: {}]
  %s5 = sld [smem:[#allocation0]]
  $region38: #{tpu_custom_call.1} parent=0
    _
  %s7 = ssub.s32 1, %s5
  %s8 = scalar_select 0, %s7, %s5
  $region1: #{tpu_custom_call.1} parent=0
    #allocation2 [shape = 'u8[8192]{0}', space=vmem, size = 0x2000, scoped, tag = 'input window, operand 0, single buffered']
    #allocation3 [shape = 's32[1]{0}', space=sflag, size = 0x4, scoped, tag = 'scoped memory for tpu_custom_call.1']
    #allocation4 [shape = 's32[1]{0}', space=sflag, size = 0x4, scoped, tag = 'scoped memory for tpu_custom_call.1']
    #allocation5 [shape = 's32[1]{0}', space=sflag, size = 0x4, scoped, tag = 'scoped memory for tpu_custom_call.1']
    #allocation6 [shape = 'u8[2048]{0}', space=smem, size = 0x800, scoped, tag = 'input window, operand 1, single buffered']
    #allocation7 [shape = 'u8[16384]{0}', space=vmem, size = 0x4000, scoped, tag = 'input window, operand 2, single buffered']
    #allocation8 [shape = 's32[1]{0}', space=sflag, size = 0x4, scoped, tag = 'scoped memory for tpu_custom_call.1']
    #allocation9 [shape = 'u8[8192]{0}', space=vmem, size = 0x2000, scoped, tag = 'output window, operand 0, single buffered']
    %9 = vsyncpa [#allocation3], 0
    %10 = vsyncpa [#allocation5], 0
    %11 = vsyncpa [#allocation8], 0
    %12 = vsyncpa [#allocation4], 0
    // Predicated region
    $region2: #{tpu_custom_call.1} parent=1 // pred_check
      _
    $region3: #{tpu_custom_call.1} parent=1 // pred_check_branch
      %14 = sbr.rel (0) target = $region5
    $region4: #{tpu_custom_call.1} parent=1 // pred_region
      %s16 = ssub.s32 256, 256
      %17 = vsyncadd [#allocation3], %s16
      %s19 = sshll.u32 [#allocation2], 4
      %s20 = int_to_ptr.vmem [resolvable:$true] %s19
      %22 = dma.hbm_to_vmem [thread:$0]  %s0, 256, %s20, [#allocation3]
    $region5: #{tpu_custom_call.1} parent=1 // pred_fallthru
      _
    // Predicated region
    $region6: #{tpu_custom_call.1} parent=1 // pred_check
      _
    $region7: #{tpu_custom_call.1} parent=1 // pred_check_branch
      %24 = sbr.rel (0) target = $region9
    $region8: #{tpu_custom_call.1} parent=1 // pred_region
      %s26 = ssub.s32 64, 64
      %27 = vsyncadd [#allocation5], %s26
      %30 = dma.hbm_to_smem %s1, 64, [#allocation6], [#allocation5]
    $region9: #{tpu_custom_call.1} parent=1 // pred_fallthru
      _
    // Predicated region
    $region10: #{tpu_custom_call.1} parent=1 // pred_check
      _
    $region11: #{tpu_custom_call.1} parent=1 // pred_check_branch
      %32 = sbr.rel (0) target = $region13
    $region12: #{tpu_custom_call.1} parent=1 // pred_region
      %s34 = ssub.s32 512, 512
      %35 = vsyncadd [#allocation8], %s34
      %s36 = sshll.u32 [#allocation7], 4
      %s37 = int_to_ptr.vmem [resolvable:$true] %s36
      %42 = dma.hbm_to_vmem [thread:$0]  %s2, 512, %s37, [#allocation8], 256, 256, 16
    $region13: #{tpu_custom_call.1} parent=1 // pred_fallthru
      _
    // Predicated region
    $region14: #{tpu_custom_call.1} parent=1 // pred_check
      _
    $region15: #{tpu_custom_call.1} parent=1 // pred_check_branch
      %44 = sbr.rel (0) target = $region17
    $region16: #{tpu_custom_call.1} parent=1 // pred_region
      _
    $region17: #{tpu_custom_call.1} parent=1 // pred_fallthru
      _
    // Predicated region
    $region18: #{tpu_custom_call.1} parent=1 // pred_check
      _
    $region19: #{tpu_custom_call.1} parent=1 // pred_check_branch
      %46 = sbr.rel (0) target = $region21
    $region20: #{tpu_custom_call.1} parent=1 // pred_region
      %47 = dma.done [#allocation3], 256
    $region21: #{tpu_custom_call.1} parent=1 // pred_fallthru
      _
    // Predicated region
    $region22: #{tpu_custom_call.1} parent=1 // pred_check
      _
    $region23: #{tpu_custom_call.1} parent=1 // pred_check_branch
      %49 = sbr.rel (0) target = $region25
    $region24: #{tpu_custom_call.1} parent=1 // pred_region
      %50 = dma.done [#allocation5], 64
    $region25: #{tpu_custom_call.1} parent=1 // pred_fallthru
      _
    // Predicated region
    $region26: #{tpu_custom_call.1} parent=1 // pred_check
      _
    $region27: #{tpu_custom_call.1} parent=1 // pred_check_branch
      %52 = sbr.rel (0) target = $region29
    $region28: #{tpu_custom_call.1} parent=1 // pred_region
      %53 = dma.done [#allocation8], 512
    $region29: #{tpu_custom_call.1} parent=1 // pred_fallthru
      _
    %54 = sfence
    %v55 = vld [vmem:[#allocation2] sm:$0xf]
    %v56 = vmax.f32 %v55, 0.0
    %v57 = vld [vmem:[#allocation2 + $0x4] sm:$0xf]
    %v58 = vmax.f32 %v57, 0.0
    %v59 = vld [vmem:[#allocation2 + $0x8] sm:$0xf]
    %v60 = vmax.f32 %v59, 0.0
    %v61 = vld [vmem:[#allocation2 + $0xc] sm:$0xf]
    %v62 = vmax.f32 %v61, 0.0
    %s63 = sld [smem:[#allocation6]]
    %v64 = vstv %s63
    %v65 = vmul.f32 %v64, %v56
    %s66 = sld [smem:[#allocation6 + $0x80]]
    %v67 = vstv %s66
    %v68 = vmul.f32 %v67, %v58
    %v69 = vadd.f32 %v65, %v68
    %s70 = sld [smem:[#allocation6 + $0x100]]
    %v71 = vstv %s70
    %v72 = vmul.f32 %v71, %v60
    %v73 = vadd.f32 %v69, %v72
    %s74 = sld [smem:[#allocation6 + $0x180]]
    %v75 = vstv %s74
    %v76 = vmul.f32 %v75, %v62
    %v77 = vadd.f32 %v73, %v76
    %v80 = vunpack.c.l.s4 1983009808
    %v81 = vunpack.c.0.s8 %v80
    %v82 = vlaneseq
    %v83 = vshrl.u32 %v82, 7
    %v84 = vsub.s32 %v81, %v83
    %v85 = vrot.slane %v77, %v84
    %v86 = vcombine.high %v85, %v85
    %89 = vrot.lane.b32.xlu0 %v85, 17
    %v90 = vpop.permute.xlu0 %89
    %91 = vrot.lane.b32.xlu0 %v86, 17
    %v92 = vpop.permute.xlu0 %91
    %v93 = vlaneseq
    %v94 = vand.u32 %v93, 127
    %vm95 = vcmp.lt.s32.totalorder %v94, 17
    %v96 = vsel %vm95, %v90, %v92
    %v97 = vsel %vm95, %v92, %v90
    %v98 = vld [vmem:[#allocation7] ss:$8 sm:$0x3]
    %v100 = vlaneseq
    %v101 = vshrl.u32 %v100, 7
    %v102 = vsub.s32 0, %v101
    %v103 = vrot.slane %v98, %v102
    %v104 = vlaneseq
    %v105 = vshrl.u32 %v104, 7
    %v106 = vsub.s32 1, %v105
    %v107 = vrot.slane %v98, %v106
    %v110 = vmul.f32 %v97, %v103
    %v111 = vmul.f32 %v96, %v107
    %s112 = sld [smem:[#allocation6 + $0x1]]
    %v113 = vstv %s112
    %v114 = vmul.f32 %v113, %v56
    %s115 = sld [smem:[#allocation6 + $0x81]]
    %v116 = vstv %s115
    %v117 = vmul.f32 %v116, %v58
    %v118 = vadd.f32 %v114, %v117
    %s119 = sld [smem:[#allocation6 + $0x101]]
    %v120 = vstv %s119
    %v121 = vmul.f32 %v120, %v60
    %v122 = vadd.f32 %v118, %v121
    %s123 = sld [smem:[#allocation6 + $0x181]]
    %v124 = vstv %s123
    %v125 = vmul.f32 %v124, %v62
    %v126 = vadd.f32 %v122, %v125
    %v129 = vunpack.c.l.s4 1983009808
    %v130 = vunpack.c.0.s8 %v129
    %v131 = vlaneseq
    %v132 = vshrl.u32 %v131, 7
    %v133 = vsub.s32 %v130, %v132
    %v134 = vrot.slane %v126, %v133
    %v135 = vcombine.high %v134, %v134
    %138 = vrot.lane.b32.xlu0 %v134, 16
    %v139 = vpop.permute.xlu0 %138
    %140 = vrot.lane.b32.xlu0 %v135, 16
    %v141 = vpop.permute.xlu0 %140
    %vm142 = vcmp.lt.s32.totalorder %v94, 16
    %v143 = vsel %vm142, %v139, %v141
    %v144 = vsel %vm142, %v141, %v139
    %s145 = scalar_lea.vmem [#allocation7], 1
    %v146 = vld [vmem:[%s145] ss:$8 sm:$0x3]
    %v148 = vlaneseq
    %v149 = vshrl.u32 %v148, 7
    %v150 = vsub.s32 0, %v149
    %v151 = vrot.slane %v146, %v150
    %v152 = vlaneseq
    %v153 = vshrl.u32 %v152, 7
    %v154 = vsub.s32 1, %v153
    %v155 = vrot.slane %v146, %v154
    %v158 = vmul.f32 %v144, %v151
    %v159 = vmul.f32 %v143, %v155
    %v160 = vadd.f32 %v110, %v158
    %v161 = vadd.f32 %v111, %v159
    %s162 = sld [smem:[#allocation6 + $0x2]]
    %v163 = vstv %s162
    %v164 = vmul.f32 %v163, %v56
    %s165 = sld [smem:[#allocation6 + $0x82]]
    %v166 = vstv %s165
    %v167 = vmul.f32 %v166, %v58
    %v168 = vadd.f32 %v164, %v167
    %s169 = sld [smem:[#allocation6 + $0x102]]
    %v170 = vstv %s169
    %v171 = vmul.f32 %v170, %v60
    %v172 = vadd.f32 %v168, %v171
    %s173 = sld [smem:[#allocation6 + $0x182]]
    %v174 = vstv %s173
    %v175 = vmul.f32 %v174, %v62
    %v176 = vadd.f32 %v172, %v175
    %v179 = vunpack.c.l.s4 1983009808
    %v180 = vunpack.c.0.s8 %v179
    %v181 = vlaneseq
    %v182 = vshrl.u32 %v181, 7
    %v183 = vsub.s32 %v180, %v182
    %v184 = vrot.slane %v176, %v183
    %v185 = vcombine.high %v184, %v184
    %188 = vrot.lane.b32.xlu0 %v184, 15
    %v189 = vpop.permute.xlu0 %188
    %190 = vrot.lane.b32.xlu0 %v185, 15
    %v191 = vpop.permute.xlu0 %190
    %vm192 = vcmp.lt.s32.totalorder %v94, 15
    %v193 = vsel %vm192, %v189, %v191
    %v194 = vsel %vm192, %v191, %v189
    %s195 = scalar_lea.vmem [#allocation7], 2
    %v196 = vld [vmem:[%s195] ss:$8 sm:$0x3]
    %v198 = vlaneseq
    %v199 = vshrl.u32 %v198, 7
    %v200 = vsub.s32 0, %v199
    %v201 = vrot.slane %v196, %v200
    %v202 = vlaneseq
    %v203 = vshrl.u32 %v202, 7
    %v204 = vsub.s32 1, %v203
    %v205 = vrot.slane %v196, %v204
    %v208 = vmul.f32 %v194, %v201
    %v209 = vmul.f32 %v193, %v205
    %v210 = vadd.f32 %v160, %v208
    %v211 = vadd.f32 %v161, %v209
    %s212 = sld [smem:[#allocation6 + $0x3]]
    %v213 = vstv %s212
    %v214 = vmul.f32 %v213, %v56
    %s215 = sld [smem:[#allocation6 + $0x83]]
    %v216 = vstv %s215
    %v217 = vmul.f32 %v216, %v58
    %v218 = vadd.f32 %v214, %v217
    %s219 = sld [smem:[#allocation6 + $0x103]]
    %v220 = vstv %s219
    %v221 = vmul.f32 %v220, %v60
    %v222 = vadd.f32 %v218, %v221
    %s223 = sld [smem:[#allocation6 + $0x183]]
    %v224 = vstv %s223
    %v225 = vmul.f32 %v224, %v62
    %v226 = vadd.f32 %v222, %v225
    %v229 = vunpack.c.l.s4 1983009808
    %v230 = vunpack.c.0.s8 %v229
    %v231 = vlaneseq
    %v232 = vshrl.u32 %v231, 7
    %v233 = vsub.s32 %v230, %v232
    %v234 = vrot.slane %v226, %v233
    %v235 = vcombine.high %v234, %v234
    %238 = vrot.lane.b32.xlu0 %v234, 1
    %v239 = vpop.permute.xlu0 %238
    %240 = vrot.lane.b32.xlu0 %v235, 1
    %v241 = vpop.permute.xlu0 %240
    %vm242 = vcmp.lt.s32.totalorder %v94, 1
    %v243 = vsel %vm242, %v239, %v241
    %v244 = vsel %vm242, %v241, %v239
    %s245 = scalar_lea.vmem [#allocation7], 3
    %v246 = vld [vmem:[%s245] ss:$8 sm:$0x3]
    %v248 = vlaneseq
    %v249 = vshrl.u32 %v248, 7
    %v250 = vsub.s32 0, %v249
    %v251 = vrot.slane %v246, %v250
    %v252 = vlaneseq
    %v253 = vshrl.u32 %v252, 7
    %v254 = vsub.s32 1, %v253
    %v255 = vrot.slane %v246, %v254
    %v258 = vmul.f32 %v244, %v251
    %v259 = vmul.f32 %v243, %v255
    %v260 = vadd.f32 %v210, %v258
    %v261 = vadd.f32 %v211, %v259
    %s262 = sld [smem:[#allocation6 + $0x4]]
    %v263 = vstv %s262
    %v264 = vmul.f32 %v263, %v56
    %s265 = sld [smem:[#allocation6 + $0x84]]
    %v266 = vstv %s265
    %v267 = vmul.f32 %v266, %v58
    %v268 = vadd.f32 %v264, %v267
    %s269 = sld [smem:[#allocation6 + $0x104]]
    %v270 = vstv %s269
    %v271 = vmul.f32 %v270, %v60
    %v272 = vadd.f32 %v268, %v271
    %s273 = sld [smem:[#allocation6 + $0x184]]
    %v274 = vstv %s273
    %v275 = vmul.f32 %v274, %v62
    %v276 = vadd.f32 %v272, %v275
    %v279 = vunpack.c.l.s4 1983009808
    %v280 = vunpack.c.0.s8 %v279
    %v281 = vlaneseq
    %v282 = vshrl.u32 %v281, 7
    %v283 = vsub.s32 %v280, %v282
    %v284 = vrot.slane %v276, %v283
    %v285 = vcombine.high %v284, %v284
    %v288 = vadd.f32 %v260, %v284
    %v289 = vadd.f32 %v261, %v285
    %s290 = sld [smem:[#allocation6 + $0x5]]
    %v291 = vstv %s290
    %v292 = vmul.f32 %v291, %v56
    %s293 = sld [smem:[#allocation6 + $0x85]]
    %v294 = vstv %s293
    %v295 = vmul.f32 %v294, %v58
    %v296 = vadd.f32 %v292, %v295
    %s297 = sld [smem:[#allocation6 + $0x105]]
    %v298 = vstv %s297
    %v299 = vmul.f32 %v298, %v60
    %v300 = vadd.f32 %v296, %v299
    %s301 = sld [smem:[#allocation6 + $0x185]]
    %v302 = vstv %s301
    %v303 = vmul.f32 %v302, %v62
    %v304 = vadd.f32 %v300, %v303
    %v307 = vunpack.c.l.s4 1983009808
    %v308 = vunpack.c.0.s8 %v307
    %v309 = vlaneseq
    %v310 = vshrl.u32 %v309, 7
    %v311 = vsub.s32 %v308, %v310
    %v312 = vrot.slane %v304, %v311
    %v313 = vcombine.high %v312, %v312
    %316 = vrot.lane.b32.xlu0 %v312, 127
    %v317 = vpop.permute.xlu0 %316
    %318 = vrot.lane.b32.xlu0 %v313, 127
    %v319 = vpop.permute.xlu0 %318
    %vm320 = vcmp.lt.s32.totalorder %v94, 127
    %v321 = vsel %vm320, %v317, %v319
    %v322 = vsel %vm320, %v319, %v317
    %s323 = scalar_lea.vmem [#allocation7], 5
    %v324 = vld [vmem:[%s323] ss:$8 sm:$0x3]
    %v326 = vlaneseq
    %v327 = vshrl.u32 %v326, 7
    %v328 = vsub.s32 0, %v327
    %v329 = vrot.slane %v324, %v328
    %v330 = vlaneseq
    %v331 = vshrl.u32 %v330, 7
    %v332 = vsub.s32 1, %v331
    %v333 = vrot.slane %v324, %v332
    %v336 = vmul.f32 %v321, %v329
    %v337 = vmul.f32 %v322, %v333
    %v338 = vadd.f32 %v288, %v336
    %v339 = vadd.f32 %v289, %v337
    %s340 = sld [smem:[#allocation6 + $0x6]]
    %v341 = vstv %s340
    %v342 = vmul.f32 %v341, %v56
    %s343 = sld [smem:[#allocation6 + $0x86]]
    %v344 = vstv %s343
    %v345 = vmul.f32 %v344, %v58
    %v346 = vadd.f32 %v342, %v345
    %s347 = sld [smem:[#allocation6 + $0x106]]
    %v348 = vstv %s347
    %v349 = vmul.f32 %v348, %v60
    %v350 = vadd.f32 %v346, %v349
    %s351 = sld [smem:[#allocation6 + $0x186]]
    %v352 = vstv %s351
    %v353 = vmul.f32 %v352, %v62
    %v354 = vadd.f32 %v350, %v353
    %v357 = vunpack.c.l.s4 1983009808
    %v358 = vunpack.c.0.s8 %v357
    %v359 = vlaneseq
    %v360 = vshrl.u32 %v359, 7
    %v361 = vsub.s32 %v358, %v360
    %v362 = vrot.slane %v354, %v361
    %v363 = vcombine.high %v362, %v362
    %366 = vrot.lane.b32.xlu0 %v362, 113
    %v367 = vpop.permute.xlu0 %366
    %368 = vrot.lane.b32.xlu0 %v363, 113
    %v369 = vpop.permute.xlu0 %368
    %vm370 = vcmp.lt.s32.totalorder %v94, 113
    %v371 = vsel %vm370, %v367, %v369
    %v372 = vsel %vm370, %v369, %v367
    %s373 = scalar_lea.vmem [#allocation7], 6
    %v374 = vld [vmem:[%s373] ss:$8 sm:$0x3]
    %v376 = vlaneseq
    %v377 = vshrl.u32 %v376, 7
    %v378 = vsub.s32 0, %v377
    %v379 = vrot.slane %v374, %v378
    %v380 = vlaneseq
    %v381 = vshrl.u32 %v380, 7
    %v382 = vsub.s32 1, %v381
    %v383 = vrot.slane %v374, %v382
    %v386 = vmul.f32 %v371, %v379
    %v387 = vmul.f32 %v372, %v383
    %v388 = vadd.f32 %v338, %v386
    %v389 = vadd.f32 %v339, %v387
    %s390 = sld [smem:[#allocation6 + $0x7]]
    %v391 = vstv %s390
    %v392 = vmul.f32 %v391, %v56
    %s393 = sld [smem:[#allocation6 + $0x87]]
    %v394 = vstv %s393
    %v395 = vmul.f32 %v394, %v58
    %v396 = vadd.f32 %v392, %v395
    %s397 = sld [smem:[#allocation6 + $0x107]]
    %v398 = vstv %s397
    %v399 = vmul.f32 %v398, %v60
    %v400 = vadd.f32 %v396, %v399
    %s401 = sld [smem:[#allocation6 + $0x187]]
    %v402 = vstv %s401
    %v403 = vmul.f32 %v402, %v62
    %v404 = vadd.f32 %v400, %v403
    %v407 = vunpack.c.l.s4 1983009808
    %v408 = vunpack.c.0.s8 %v407
    %v409 = vlaneseq
    %v410 = vshrl.u32 %v409, 7
    %v411 = vsub.s32 %v408, %v410
    %v412 = vrot.slane %v404, %v411
    %v413 = vcombine.high %v412, %v412
    %416 = vrot.lane.b32.xlu0 %v412, 112
    %v417 = vpop.permute.xlu0 %416
    %418 = vrot.lane.b32.xlu0 %v413, 112
    %v419 = vpop.permute.xlu0 %418
    %vm420 = vcmp.lt.s32.totalorder %v94, 112
    %v421 = vsel %vm420, %v417, %v419
    %v422 = vsel %vm420, %v419, %v417
    %s423 = scalar_lea.vmem [#allocation7], 7
    %v424 = vld [vmem:[%s423] ss:$8 sm:$0x3]
    %v426 = vlaneseq
    %v427 = vshrl.u32 %v426, 7
    %v428 = vsub.s32 0, %v427
    %v429 = vrot.slane %v424, %v428
    %v430 = vlaneseq
    %v431 = vshrl.u32 %v430, 7
    %v432 = vsub.s32 1, %v431
    %v433 = vrot.slane %v424, %v432
    %v436 = vmul.f32 %v421, %v429
    %v437 = vmul.f32 %v422, %v433
    %v438 = vadd.f32 %v388, %v436
    %v439 = vadd.f32 %v389, %v437
    %s440 = sld [smem:[#allocation6 + $0x8]]
    %v441 = vstv %s440
    %v442 = vmul.f32 %v441, %v56
    %s443 = sld [smem:[#allocation6 + $0x88]]
    %v444 = vstv %s443
    %v445 = vmul.f32 %v444, %v58
    %v446 = vadd.f32 %v442, %v445
    %s447 = sld [smem:[#allocation6 + $0x108]]
    %v448 = vstv %s447
    %v449 = vmul.f32 %v448, %v60
    %v450 = vadd.f32 %v446, %v449
    %s451 = sld [smem:[#allocation6 + $0x188]]
    %v452 = vstv %s451
    %v453 = vmul.f32 %v452, %v62
    %v454 = vadd.f32 %v450, %v453
    %v457 = vunpack.c.l.s4 1983009808
    %v458 = vunpack.c.0.s8 %v457
    %v459 = vlaneseq
    %v460 = vshrl.u32 %v459, 7
    %v461 = vsub.s32 %v458, %v460
    %v462 = vrot.slane %v454, %v461
    %v463 = vcombine.high %v462, %v462
    %466 = vrot.lane.b32.xlu0 %v462, 111
    %v467 = vpop.permute.xlu0 %466
    %468 = vrot.lane.b32.xlu0 %v463, 111
    %v469 = vpop.permute.xlu0 %468
    %vm470 = vcmp.lt.s32.totalorder %v94, 111
    %v471 = vsel %vm470, %v467, %v469
    %v472 = vsel %vm470, %v469, %v467
    %s473 = scalar_lea.vmem [#allocation7], 16
    %v474 = vld [vmem:[%s473] ss:$8 sm:$0x3]
    %v476 = vlaneseq
    %v477 = vshrl.u32 %v476, 7
    %v478 = vsub.s32 0, %v477
    %v479 = vrot.slane %v474, %v478
    %v480 = vlaneseq
    %v481 = vshrl.u32 %v480, 7
    %v482 = vsub.s32 1, %v481
    %v483 = vrot.slane %v474, %v482
    %v486 = vmul.f32 %v471, %v479
    %v487 = vmul.f32 %v472, %v483
    %v488 = vadd.f32 %v438, %v486
    %v489 = vadd.f32 %v439, %v487
    %v490 = vld [vmem:[%s3] sm:$0x3]
    %v492 = vlaneseq
    %v493 = vshrl.u32 %v492, 7
    %v494 = vsub.s32 0, %v493
    %v495 = vrot.slane %v490, %v494
    %v496 = vlaneseq
    %v497 = vshrl.u32 %v496, 7
    %v498 = vsub.s32 1, %v497
    %v499 = vrot.slane %v490, %v498
    %v502 = vadd.f32 %v488, %v495
    %v503 = vadd.f32 %v489, %v499
    %v504 = vxor.u32 %v502, 2147483648
    %v505 = vxor.u32 %v503, 2147483648
    %v506 = vmul.f32 %v504, 1.442695
    %v507 = vpow.pop %v506
    %v508 = vmul.f32 %v505, 1.442695
    %v509 = vpow.pop %v508
    %v510 = vadd.f32 %v507, 1.0
    %v511 = vadd.f32 %v509, 1.0
    %v512 = vrcp.pop %v510
    %v513 = vmul.f32 1.0, %v512
    %v514 = vrcp.pop %v511
    %v515 = vmul.f32 1.0, %v514
    %v518 = vcombine.low %v513, %v515
    %v520 = vunpack.c.l.s4 1983009808
    %v521 = vunpack.c.0.s8 %v520
    %v522 = vlaneseq
    %v523 = vshrl.u32 %v522, 7
    %v524 = vsub.s32 %v521, %v523
    %v525 = vrot.slane %v518, %v524
    %v527 = vmul.f32 %v55, %v525
    %528 = vst [vmem:[#allocation9] sm:$0xf] %v527
    %v529 = vld [vmem:[#allocation2 + $0x4] sm:$0xf]
    %v530 = vmul.f32 %v529, %v525
    %531 = vst [vmem:[#allocation9 + $0x4] sm:$0xf] %v530
    %v532 = vld [vmem:[#allocation2 + $0x8] sm:$0xf]
    %v533 = vmul.f32 %v532, %v525
    %534 = vst [vmem:[#allocation9 + $0x8] sm:$0xf] %v533
    %v535 = vld [vmem:[#allocation2 + $0xc] sm:$0xf]
    %v536 = vmul.f32 %v535, %v525
    %537 = vst [vmem:[#allocation9 + $0xc] sm:$0xf] %v536
    // Predicated region
    $region30: #{tpu_custom_call.1} parent=1 // pred_check
      _
    $region31: #{tpu_custom_call.1} parent=1 // pred_check_branch
      %539 = sbr.rel (0) target = $region33
    $region32: #{tpu_custom_call.1} parent=1 // pred_region
      %s541 = ssub.s32 256, 256
      %542 = vsyncadd [#allocation4], %s541
      %s544 = sshll.u32 [#allocation9], 4
      %s545 = int_to_ptr.vmem [resolvable:$true] %s544
      %547 = dma.vmem_to_hbm [thread:$0]  %s545, 256, %s4, [#allocation4]
    $region33: #{tpu_custom_call.1} parent=1 // pred_fallthru
      _
    // Predicated region
    $region34: #{tpu_custom_call.1} parent=1 // pred_check
      _
    $region35: #{tpu_custom_call.1} parent=1 // pred_check_branch
      %549 = sbr.rel (0) target = $region37
    $region36: #{tpu_custom_call.1} parent=1 // pred_region
      %550 = dma.done [#allocation4], 256
    $region37: #{tpu_custom_call.1} parent=1 // pred_fallthru
      _
    %551 = vsyncpa [#allocation3], 1
    %552 = vsyncpa [#allocation8], 1
    %553 = vsyncpa [#allocation4], 1
    %554 = vsyncpa [#allocation5], 1

</llo_original>
